<compile_context>
chip_gen: v5e
topology: v5e:2x2
jax: 0.10.0
libtpu: 0.0.40
codegen_flags: <defaults>
</compile_context>

<pallas_src>
import functools

import jax
import jax.numpy as jnp
from jax.experimental import pallas as pl
from jax.experimental.pallas import tpu as pltpu

BN_EPS = 1e-5


def _vmem_limit_bytes():
    """Per-generation VMEM budget: ~3/4 of physical capacity, capped at 100 MiB."""
    cap = None
    try:
        cap = getattr(pltpu.get_tpu_info(), "vmem_capacity_bytes", None)
    except Exception:
        cap = None
    if not cap:
        cap = 64 * 1024 * 1024          # conservative fallback (v7x physical per-TC)
    return int(min(cap * 3 // 4, 100 * 1024 * 1024))


# ----------------------------------------------------------------------------- kernels
def _conv_tile(xm_ref, xh_ref, w_ref, *, kernel_size, stride):
    """Conv1d for one (C_out, TILE_L) output tile as a single MXU contraction.

    xm_ref : (stride, C_in, TILE_L)   phase-decomposed main tile
    xh_ref : (stride, C_in, halo)     halo columns just past the tile
    w_ref  : (C_out, K*C_in)          taps folded into the contraction dim
    """
    tile_l = xm_ref.shape[-1]
    xw = jnp.concatenate([xm_ref[...], xh_ref[...]], axis=-1)      # (stride, C_in, TILE_L+halo)
    rows = [xw[k % stride, :, k // stride:k // stride + tile_l]    # K static lane slices
            for k in range(kernel_size)]
    rhs = jnp.concatenate(rows, axis=0) if kernel_size > 1 else rows[0]   # (K*C_in, TILE_L)
    return jnp.dot(w_ref[...], rhs, preferred_element_type=jnp.float32)   # (C_out, TILE_L) f32


def _conv_stats_kernel(xm_ref, xh_ref, w_ref, *out_refs,
                       kernel_size, stride, tile_l, valid_l, stash):
    """Pass 1: per-batch-element conv sum / sum-of-squares (+ optional pre-BN stash)."""
    if stash:
        conv_ref, sum_ref, sq_ref = out_refs
    else:
        sum_ref, sq_ref = out_refs
    li = pl.program_id(1)

    @pl.when(li == 0)
    def _init():
        sum_ref[...] = jnp.zeros_like(sum_ref)
        sq_ref[...] = jnp.zeros_like(sq_ref)

    acc = _conv_tile(xm_ref, xh_ref, w_ref, kernel_size=kernel_size, stride=stride)
    if stash:
        conv_ref[...] = acc
    if valid_l is not None:                       # ragged L_out: mask padded columns
        col = li * tile_l + jax.lax.broadcasted_iota(jnp.int32, acc.shape, 1)
        acc = jnp.where(col < valid_l, acc, 0.0)
    sum_ref[...] += jnp.sum(acc, axis=1, keepdims=True)
    sq_ref[...] += jnp.sum(acc * acc, axis=1, keepdims=True)


def _bn_relu_kernel(conv_ref, ss_ref, out_ref):
    """Pass 2 (stash mode): pure elementwise folded-BN + ReLU epilogue."""
    ss = ss_ref[...]
    y = conv_ref[...] * ss[:, 0:1] + ss[:, 1:2]
    out_ref[...] = jnp.maximum(y, 0.0).astype(out_ref.dtype)


def _conv_bn_relu_kernel(xm_ref, xh_ref, w_ref, ss_ref, out_ref, *, kernel_size, stride):
    """Pass 2 (recompute mode): conv tile + folded-BN + ReLU."""
    acc = _conv_tile(xm_ref, xh_ref, w_ref, kernel_size=kernel_size, stride=stride)
    ss = ss_ref[...]
    y = acc * ss[:, 0:1] + ss[:, 1:2]
    out_ref[...] = jnp.maximum(y, 0.0).astype(out_ref.dtype)


# ----------------------------------------------------------------------------- wrapper
@functools.partial(jax.jit, static_argnames=("stride", "padding", "stash"))
def conv_bn_activate_forward(x, conv_weight, bn_gamma, bn_beta, *,
                             stride, padding, stash=None):
    """x: (N, C_in, L) NCL.  conv_weight: (C_out, C_in, K).  -> (N, C_out, L_out)."""
    n, c_in, l = x.shape
    c_out, _, k = conv_weight.shape
    l_out = (l + 2 * padding - k) // stride + 1
    out_dtype = x.dtype
    x_it = jnp.dtype(x.dtype).itemsize
    out_it = jnp.dtype(out_dtype).itemsize

    vmem_limit = _vmem_limit_bytes()

    # ---- L tiling: lane-dense 128-multiple, largest tile that fits the VMEM budget.
    l_out_pad = ((l_out + 127) // 128) * 128
    bytes_per_col = stride * c_in * x_it + c_out * 4 + c_out * out_it
    tile_l = 128
    for cand in (2048, 1024, 512, 256):
        if l_out_pad % cand == 0 and 2 * cand * bytes_per_col <= vmem_limit // 3:
            tile_l = cand
            break
    n_lt = l_out_pad // tile_l
    valid_l = l_out if l_out != l_out_pad else None
    halo = (k - 1) // stride
    halo_eff = max(halo, 1)
    assert halo_eff <= tile_l, "kernel_size too large for this tiling"

    # ---- Phase decomposition (no K-fold im2col blow-up):
    #   x_ph[b, p, c, j] = x_pad[b, c, j*stride + p], so tap k of output column o
    #   reads x_ph[k % stride, :, o + k//stride].
    # TODO(synk): the jnp.pad below is one extra HBM copy of x; removing it would need
    # in-kernel masking of the boundary columns.
    l_main = n_lt * tile_l
    need_cols = l_main + halo_eff
    need_len = stride * need_cols
    pad_right = max(0, need_len - (l + 2 * padding))
    x_pad = jnp.pad(x, ((0, 0), (0, 0), (padding, padding + pad_right)))[:, :, :need_len]
    if stride == 1:
        x_ph = x_pad[:, None, :, :]                                      # (N,1,C_in,need_cols)
    else:
        x_ph = jnp.transpose(x_pad.reshape(n, c_in, need_cols, stride), (0, 3, 1, 2))
    x_main = x_ph[:, :, :, :l_main]                                      # (N,stride,C_in,L_main)
    halo_cols = ((jnp.arange(n_lt, dtype=jnp.int32)[:, None] + 1) * tile_l
                 + jnp.arange(halo_eff, dtype=jnp.int32)[None, :])        # (n_lt, halo)
    x_halo = jnp.transpose(x_ph[:, :, :, halo_cols], (0, 3, 1, 2, 4))     # (N,n_lt,stride,C_in,halo)

    # Taps folded into the MXU contraction dim: w2[:, k*C_in + ci] = w[:, ci, k]
    w2 = jnp.transpose(conv_weight, (0, 2, 1)).reshape(c_out, k * c_in)

    # ---- Pass-2 strategy (static): stash the pre-BN conv vs recompute it.
    conv_flops = 2 * n * l_out_pad * c_in * k * c_out
    x_bytes = n * stride * c_in * (l_main + n_lt * halo_eff) * x_it
    w_bytes = c_out * c_in * k * 4
    out_bytes = n * c_out * l_out_pad * out_it
    stash_rw_bytes = 2 * n * c_out * l_out_pad * 4   # f32 write (pass 1) + read (pass 2)
    if stash is None:
        stash = stash_rw_bytes <= x_bytes + conv_flops / 200.0  # ~MXU-flop : HBM-byte parity

    grid = (n, n_lt)
    xm_spec = pl.BlockSpec((None, stride, c_in, tile_l), lambda ni, li: (ni, 0, 0, li))
    xh_spec = pl.BlockSpec((None, None, stride, c_in, halo_eff),
                           lambda ni, li: (ni, li, 0, 0, 0))
    w_spec = pl.BlockSpec((c_out, k * c_in), lambda ni, li: (0, 0))
    stat_spec = pl.BlockSpec((None, c_out, 1), lambda ni, li: (ni, 0, 0))
    act_spec = pl.BlockSpec((None, c_out, tile_l), lambda ni, li: (ni, 0, li))

    # ---- Pass 1: conv + per-N partial stats (+ optional stash of the pre-BN conv).
    out_shape1, out_specs1 = [], []
    if stash:
        out_shape1.append(jax.ShapeDtypeStruct((n, c_out, l_out_pad), jnp.float32))
        out_specs1.append(act_spec)
    out_shape1 += [jax.ShapeDtypeStruct((n, c_out, 1), jnp.float32)] * 2
    out_specs1 += [stat_spec, stat_spec]

    res1 = pl.pallas_call(
        functools.partial(_conv_stats_kernel, kernel_size=k, stride=stride,
                          tile_l=tile_l, valid_l=valid_l, stash=stash),
        out_shape=tuple(out_shape1),
        grid=grid,
        in_specs=[xm_spec, xh_spec, w_spec],
        out_specs=tuple(out_specs1),
        compiler_params=pltpu.CompilerParams(
            dimension_semantics=("parallel", "arbitrary"),
            vmem_limit_bytes=vmem_limit),
        cost_estimate=pl.CostEstimate(
            flops=int(conv_flops + 4 * n * c_out * l_out_pad), transcendentals=0,
            bytes_accessed=int(x_bytes + w_bytes + 8 * n * c_out
                               + (stash_rw_bytes // 2 if stash else 0))),
    )(x_main, x_halo, w2)
    if stash:
        conv_pre, sum_n, sq_n = res1
    else:
        sum_n, sq_n = res1

    # ---- Fold training-mode BatchNorm1d (biased variance, eps=1e-5) into scale/shift.
    r_total = n * l_out
    sum_c = jnp.sum(sum_n[:, :, 0], axis=0)
    sq_c = jnp.sum(sq_n[:, :, 0], axis=0)
    mean = sum_c / r_total
    # TODO(synk): E[x^2]-E[x]^2 in f32 can cancel for very large N*L; a compensated /
    # Welford-style pass-1 accumulator would be more robust at scale.
    var = jnp.maximum(sq_c / r_total - mean * mean, 0.0)
    scale = bn_gamma.astype(jnp.float32) * jax.lax.rsqrt(var + BN_EPS)
    shift = bn_beta.astype(jnp.float32) - mean * scale
    ss = jnp.stack([scale, shift], axis=1)                       # (C_out, 2)
    # TODO(synk): BatchNorm1d running_mean / running_var (unbiased) state updates are a
    # training-time side effect and are not produced by this forward pass.

    ss_spec = pl.BlockSpec((c_out, 2), lambda ni, li: (0, 0))
    params2 = pltpu.CompilerParams(dimension_semantics=("parallel", "parallel"),
                                   vmem_limit_bytes=vmem_limit)

    # ---- Pass 2: folded BN + ReLU (elementwise over the stashed conv, or recompute).
    if stash:
        out_pad = pl.pallas_call(
            _bn_relu_kernel,
            out_shape=jax.ShapeDtypeStruct((n, c_out, l_out_pad), out_dtype),
            grid=grid,
            in_specs=[act_spec, ss_spec],
            out_specs=act_spec,
            compiler_params=params2,
            cost_estimate=pl.CostEstimate(
                flops=int(3 * n * c_out * l_out_pad), transcendentals=0,
                bytes_accessed=int(stash_rw_bytes // 2 + out_bytes + 8 * c_out)),
        )(conv_pre, ss)
    else:
        out_pad = pl.pallas_call(
            functools.partial(_conv_bn_relu_kernel, kernel_size=k, stride=stride),
            out_shape=jax.ShapeDtypeStruct((n, c_out, l_out_pad), out_dtype),
            grid=grid,
            in_specs=[xm_spec, xh_spec, w_spec, ss_spec],
            out_specs=act_spec,
            compiler_params=params2,
            cost_estimate=pl.CostEstimate(
                flops=int(conv_flops + 3 * n * c_out * l_out_pad), transcendentals=0,
                bytes_accessed=int(x_bytes + w_bytes + out_bytes + 8 * c_out)),
        )(x_main, x_halo, w2, ss)

    return out_pad[:, :, :l_out] if valid_l is not None else out_pad


# --------------------------------------------------------------------------- reference
def _reference(x, w, gamma, beta, stride, padding):
    """Pure-JAX reference: Conv1d(bias=False) + BatchNorm1d(train) + ReLU."""
    conv = jax.lax.conv_general_dilated(
        x, w, window_strides=(stride,), padding=[(padding, padding)],
        dimension_numbers=("NCH", "OIH", "NCH"),
        precision=jax.lax.Precision.HIGHEST)
    mean = conv.mean(axis=(0, 2), keepdims=True)
    var = ((conv - mean) ** 2).mean(axis=(0, 2), keepdims=True)
    y = ((conv - mean) * jax.lax.rsqrt(var + BN_EPS) * gamma.reshape(1, -1, 1)
         + beta.reshape(1, -1, 1))
    return jnp.maximum(y, 0.0)


def _run_case(name, n, c_in, l, c_out, k, stride, pad, seed, stash=None):
    kx, kw, kg, kb = jax.random.split(jax.random.PRNGKey(seed), 4)
    x = jax.random.normal(kx, (n, c_in, l), dtype=jnp.float32)
    w = jax.random.normal(kw, (c_out, c_in, k), dtype=jnp.float32) / ((c_in * k) ** 0.5)
    gamma = 1.0 + 0.1 * jax.random.normal(kg, (c_out,), dtype=jnp.float32)
    beta = 0.1 * jax.random.normal(kb, (c_out,), dtype=jnp.float32)

    out = conv_bn_activate_forward(x, w, gamma, beta,
                                   stride=stride, padding=pad, stash=stash)
    out = jax.block_until_ready(out)
    l_out = (l + 2 * pad - k) // stride + 1
    assert out.shape == (n, c_out, l_out), (name, out.shape)

    ref = _reference(x, w, gamma, beta, stride, pad)
    err = float(jnp.max(jnp.abs(out - ref)))
    assert err < 5e-2, f"{name}: mismatch vs reference, max_err={err}"


if __name__ == "__main__":
    # Module config: conv_bn_activate_layer(4, 8, 3, 1, 1, activation='relu', bias=False)
    _run_case("base", n=2, c_in=4, l=16, c_out=8, k=3, stride=1, pad=1, seed=0)
    # Strided / ragged config exercising halo tiling across tiles, stats masking and
    # both pass-2 modes (stashed-conv epilogue vs recompute).
    _run_case("strided_stash", n=2, c_in=8, l=599, c_out=16, k=5, stride=2, pad=2,
              seed=1, stash=True)
    _run_case("strided_recompute", n=2, c_in=8, l=599, c_out=16, k=5, stride=2, pad=2,
              seed=1, stash=False)
    print("KERNEL_OK")
</pallas_src>

<mosaic_0001>
module attributes {stable_mosaic.version = 11 : i64} {
  func.func @_conv_stats_kernel(%arg0: i32, %arg1: i32, %arg2: memref<1x1x4x128xf32, #tpu.memory_space<vmem>>, %arg3: memref<1x1x1x4x2xf32, #tpu.memory_space<vmem>>, %arg4: memref<8x12xf32, #tpu.memory_space<vmem>>, %arg5: memref<1x8x1xf32, #tpu.memory_space<vmem>>, %arg6: memref<1x8x1xf32, #tpu.memory_space<vmem>>) attributes {dimension_semantics = [#tpu.dimension_semantics<parallel>, #tpu.dimension_semantics<arbitrary>], iteration_bounds = array<i64: 2, 1>, scalar_prefetch = 0 : i64, scratch_operands = 0 : i64, tpu.core_type = #tpu.core_type<tc>, window_params = [{transform_indices = @transform_0, window_bounds = array<i64: 1, 1, 4, 128>}, {transform_indices = @transform_1, window_bounds = array<i64: 1, 1, 1, 4, 2>}, {pipeline_mode = #tpu.pipeline_mode<synchronous>, transform_indices = @transform_2, window_bounds = array<i64: 8, 12>}, {transform_indices = @transform_3, window_bounds = array<i64: 1, 8, 1>}, {transform_indices = @transform_4, window_bounds = array<i64: 1, 8, 1>}]} {
    %c0_i32 = arith.constant 0 : i32
    %0 = arith.cmpi eq, %arg1, %c0_i32 : i32
    %1 = arith.extui %0 : i1 to i32
    %c0_i32_0 = arith.constant 0 : i32
    %2 = arith.cmpi ne, %1, %c0_i32_0 : i32
    scf.if %2 {
      %cst_26 = arith.constant 0.000000e+00 : f32
      %42 = vector.broadcast %cst_26 : f32 to vector<8x1xf32>
      %c0_27 = arith.constant 0 : index
      %c0_28 = arith.constant 0 : index
      %c0_29 = arith.constant 0 : index
      %43 = vector.load %arg5[%c0_27, %c0_28, %c0_29] : memref<1x8x1xf32, #tpu.memory_space<vmem>>, vector<1x8x1xf32>
      %44 = vector.shape_cast %43 : vector<1x8x1xf32> to vector<8x1xf32>
      %45 = vector.shape_cast %42 : vector<8x1xf32> to vector<1x8x1xf32>
      tpu.vector_store %arg5[%c0_27, %c0_28, %c0_29], %45 {strides = array<i32>} : memref<1x8x1xf32, #tpu.memory_space<vmem>>, vector<1x8x1xf32>,
      %cst_30 = arith.constant 0.000000e+00 : f32
      %46 = vector.broadcast %cst_30 : f32 to vector<8x1xf32>
      %c0_31 = arith.constant 0 : index
      %c0_32 = arith.constant 0 : index
      %c0_33 = arith.constant 0 : index
      %47 = vector.load %arg6[%c0_31, %c0_32, %c0_33] : memref<1x8x1xf32, #tpu.memory_space<vmem>>, vector<1x8x1xf32>
      %48 = vector.shape_cast %47 : vector<1x8x1xf32> to vector<8x1xf32>
      %49 = vector.shape_cast %46 : vector<8x1xf32> to vector<1x8x1xf32>
      tpu.vector_store %arg6[%c0_31, %c0_32, %c0_33], %49 {strides = array<i32>} : memref<1x8x1xf32, #tpu.memory_space<vmem>>, vector<1x8x1xf32>,
    } else {
    }
    %c0 = arith.constant 0 : index
    %c0_1 = arith.constant 0 : index
    %c0_2 = arith.constant 0 : index
    %c0_3 = arith.constant 0 : index
    %3 = vector.load %arg2[%c0, %c0_1, %c0_2, %c0_3] : memref<1x1x4x128xf32, #tpu.memory_space<vmem>>, vector<1x1x4x128xf32>
    %4 = vector.shape_cast %3 : vector<1x1x4x128xf32> to vector<1x4x128xf32>
    %c0_4 = arith.constant 0 : index
    %c0_5 = arith.constant 0 : index
    %c0_6 = arith.constant 0 : index
    %c0_7 = arith.constant 0 : index
    %c0_8 = arith.constant 0 : index
    %5 = vector.load %arg3[%c0_4, %c0_5, %c0_6, %c0_7, %c0_8] : memref<1x1x1x4x2xf32, #tpu.memory_space<vmem>>, vector<1x1x1x4x2xf32>
    %6 = vector.shape_cast %5 : vector<1x1x1x4x2xf32> to vector<1x4x2xf32>
    %7 = tpu.concatenate %4, %6 in 2 : vector<1x4x128xf32>, vector<1x4x2xf32> -> vector<1x4x130xf32>
    %8 = vector.extract_strided_slice %7 {offsets = [0, 0, 0], sizes = [1, 4, 128], strides = [1, 1, 1]} : vector<1x4x130xf32> to vector<1x4x128xf32>
    %9 = vector.shape_cast %8 : vector<1x4x128xf32> to vector<4x128xf32>
    %10 = vector.extract_strided_slice %7 {offsets = [0, 0, 1], sizes = [1, 4, 128], strides = [1, 1, 1]} : vector<1x4x130xf32> to vector<1x4x128xf32>
    %11 = vector.shape_cast %10 : vector<1x4x128xf32> to vector<4x128xf32>
    %12 = vector.extract_strided_slice %7 {offsets = [0, 0, 2], sizes = [1, 4, 128], strides = [1, 1, 1]} : vector<1x4x130xf32> to vector<1x4x128xf32>
    %13 = vector.shape_cast %12 : vector<1x4x128xf32> to vector<4x128xf32>
    %14 = tpu.concatenate %9, %11, %13 in 0 : vector<4x128xf32>, vector<4x128xf32>, vector<4x128xf32> -> vector<12x128xf32>
    %c0_9 = arith.constant 0 : index
    %c0_10 = arith.constant 0 : index
    %15 = vector.load %arg4[%c0_9, %c0_10] : memref<8x12xf32, #tpu.memory_space<vmem>>, vector<8x12xf32>
    %cst = arith.constant dense<0.000000e+00> : vector<8x128xf32>
    %16 = tpu.matmul %15, %14, %cst {dimension_numbers = #tpu.dot_dimension_numbers<[1], [0], [0], [1], [0, 0, 1, 1], [], []>} : vector<8x12xf32>, vector<12x128xf32>, vector<8x128xf32> -> vector<8x128xf32>
    %c128_i32 = arith.constant 128 : i32
    %17 = arith.muli %arg1, %c128_i32 : i32
    %18 = tpu.iota {dimensions = array<i32: 1>} : vector<8x128xi32>
    %19 = vector.broadcast %17 : i32 to vector<8x128xi32>
    %20 = arith.addi %19, %18 : vector<8x128xi32>
    %c16_i32 = arith.constant 16 : i32
    %21 = vector.broadcast %c16_i32 : i32 to vector<8x128xi32>
    %22 = arith.cmpi slt, %20, %21 : vector<8x128xi32>
    %cst_11 = arith.constant 0.000000e+00 : f32
    %23 = vector.broadcast %cst_11 : f32 to vector<8x128xf32>
    %24 = arith.select %22, %16, %23 : vector<8x128xi1>, vector<8x128xf32>
    %c0_12 = arith.constant 0 : index
    %c0_13 = arith.constant 0 : index
    %c0_14 = arith.constant 0 : index
    %25 = vector.load %arg5[%c0_12, %c0_13, %c0_14] : memref<1x8x1xf32, #tpu.memory_space<vmem>>, vector<1x8x1xf32>
    %26 = vector.shape_cast %25 : vector<1x8x1xf32> to vector<8x1xf32>
    %cst_15 = arith.constant dense<0.000000e+00> : vector<8xf32>
    %27 = vector.multi_reduction <add>, %24, %cst_15 [1] : vector<8x128xf32> to vector<8xf32>
    %28 = vector.shape_cast %27 : vector<8xf32> to vector<8x1xf32>
    %29 = arith.addf %26, %28 : vector<8x1xf32>
    %c0_16 = arith.constant 0 : index
    %c0_17 = arith.constant 0 : index
    %c0_18 = arith.constant 0 : index
    %30 = vector.load %arg5[%c0_16, %c0_17, %c0_18] : memref<1x8x1xf32, #tpu.memory_space<vmem>>, vector<1x8x1xf32>
    %31 = vector.shape_cast %30 : vector<1x8x1xf32> to vector<8x1xf32>
    %32 = vector.shape_cast %29 : vector<8x1xf32> to vector<1x8x1xf32>
    tpu.vector_store %arg5[%c0_16, %c0_17, %c0_18], %32 {strides = array<i32>} : memref<1x8x1xf32, #tpu.memory_space<vmem>>, vector<1x8x1xf32>,
    %c0_19 = arith.constant 0 : index
    %c0_20 = arith.constant 0 : index
    %c0_21 = arith.constant 0 : index
    %33 = vector.load %arg6[%c0_19, %c0_20, %c0_21] : memref<1x8x1xf32, #tpu.memory_space<vmem>>, vector<1x8x1xf32>
    %34 = vector.shape_cast %33 : vector<1x8x1xf32> to vector<8x1xf32>
    %35 = arith.mulf %24, %24 : vector<8x128xf32>
    %cst_22 = arith.constant dense<0.000000e+00> : vector<8xf32>
    %36 = vector.multi_reduction <add>, %35, %cst_22 [1] : vector<8x128xf32> to vector<8xf32>
    %37 = vector.shape_cast %36 : vector<8xf32> to vector<8x1xf32>
    %38 = arith.addf %34, %37 : vector<8x1xf32>
    %c0_23 = arith.constant 0 : index
    %c0_24 = arith.constant 0 : index
    %c0_25 = arith.constant 0 : index
    %39 = vector.load %arg6[%c0_23, %c0_24, %c0_25] : memref<1x8x1xf32, #tpu.memory_space<vmem>>, vector<1x8x1xf32>
    %40 = vector.shape_cast %39 : vector<1x8x1xf32> to vector<8x1xf32>
    %41 = vector.shape_cast %38 : vector<8x1xf32> to vector<1x8x1xf32>
    tpu.vector_store %arg6[%c0_23, %c0_24, %c0_25], %41 {strides = array<i32>} : memref<1x8x1xf32, #tpu.memory_space<vmem>>, vector<1x8x1xf32>,
    return
  }
  func.func @transform_0(%arg0: i32, %arg1: i32) -> (i32, i32, i32, i32) {
    %c0_i32 = arith.constant 0 : i32
    %c0_i32_0 = arith.constant 0 : i32
    %c0_i32_1 = arith.constant 0 : i32
    return %arg0, %c0_i32, %c0_i32_0, %arg1 : i32, i32, i32, i32
  }
  func.func @transform_1(%arg0: i32, %arg1: i32) -> (i32, i32, i32, i32, i32) {
    %c0_i32 = arith.constant 0 : i32
    %c0_i32_0 = arith.constant 0 : i32
    %c0_i32_1 = arith.constant 0 : i32
    %c0_i32_2 = arith.constant 0 : i32
    return %arg0, %arg1, %c0_i32, %c0_i32_0, %c0_i32_1 : i32, i32, i32, i32, i32
  }
  func.func @transform_2(%arg0: i32, %arg1: i32) -> (i32, i32) {
    %c0_i32 = arith.constant 0 : i32
    %c0_i32_0 = arith.constant 0 : i32
    %c0_i32_1 = arith.constant 0 : i32
    return %c0_i32, %c0_i32_0 : i32, i32
  }
  func.func @transform_3(%arg0: i32, %arg1: i32) -> (i32, i32, i32) {
    %c0_i32 = arith.constant 0 : i32
    %c0_i32_0 = arith.constant 0 : i32
    %c0_i32_1 = arith.constant 0 : i32
    return %arg0, %c0_i32, %c0_i32_0 : i32, i32, i32
  }
  func.func @transform_4(%arg0: i32, %arg1: i32) -> (i32, i32, i32) {
    %c0_i32 = arith.constant 0 : i32
    %c0_i32_0 = arith.constant 0 : i32
    %c0_i32_1 = arith.constant 0 : i32
    return %arg0, %c0_i32, %c0_i32_0 : i32, i32, i32
  }
}

module attributes {stable_mosaic.version = 11 : i64} {
  func.func @_conv_bn_relu_kernel(%arg0: i32, %arg1: i32, %arg2: memref<1x1x4x128xf32, #tpu.memory_space<vmem>>, %arg3: memref<1x1x1x4x2xf32, #tpu.memory_space<vmem>>, %arg4: memref<8x12xf32, #tpu.memory_space<vmem>>, %arg5: memref<8x2xf32, #tpu.memory_space<vmem>>, %arg6: memref<1x8x128xf32, #tpu.memory_space<vmem>>) attributes {dimension_semantics = [#tpu.dimension_semantics<parallel>, #tpu.dimension_semantics<parallel>], iteration_bounds = array<i64: 2, 1>, scalar_prefetch = 0 : i64, scratch_operands = 0 : i64, tpu.core_type = #tpu.core_type<tc>, window_params = [{transform_indices = @transform_0, window_bounds = array<i64: 1, 1, 4, 128>}, {transform_indices = @transform_1, window_bounds = array<i64: 1, 1, 1, 4, 2>}, {pipeline_mode = #tpu.pipeline_mode<synchronous>, transform_indices = @transform_2, window_bounds = array<i64: 8, 12>}, {pipeline_mode = #tpu.pipeline_mode<synchronous>, transform_indices = @transform_3, window_bounds = array<i64: 8, 2>}, {transform_indices = @transform_4, window_bounds = array<i64: 1, 8, 128>}]} {
    %c0 = arith.constant 0 : index
    %c0_0 = arith.constant 0 : index
    %c0_1 = arith.constant 0 : index
    %c0_2 = arith.constant 0 : index
    %0 = vector.load %arg2[%c0, %c0_0, %c0_1, %c0_2] : memref<1x1x4x128xf32, #tpu.memory_space<vmem>>, vector<1x1x4x128xf32>
    %1 = vector.shape_cast %0 : vector<1x1x4x128xf32> to vector<1x4x128xf32>
    %c0_3 = arith.constant 0 : index
    %c0_4 = arith.constant 0 : index
    %c0_5 = arith.constant 0 : index
    %c0_6 = arith.constant 0 : index
    %c0_7 = arith.constant 0 : index
    %2 = vector.load %arg3[%c0_3, %c0_4, %c0_5, %c0_6, %c0_7] : memref<1x1x1x4x2xf32, #tpu.memory_space<vmem>>, vector<1x1x1x4x2xf32>
    %3 = vector.shape_cast %2 : vector<1x1x1x4x2xf32> to vector<1x4x2xf32>
    %4 = tpu.concatenate %1, %3 in 2 : vector<1x4x128xf32>, vector<1x4x2xf32> -> vector<1x4x130xf32>
    %5 = vector.extract_strided_slice %4 {offsets = [0, 0, 0], sizes = [1, 4, 128], strides = [1, 1, 1]} : vector<1x4x130xf32> to vector<1x4x128xf32>
    %6 = vector.shape_cast %5 : vector<1x4x128xf32> to vector<4x128xf32>
    %7 = vector.extract_strided_slice %4 {offsets = [0, 0, 1], sizes = [1, 4, 128], strides = [1, 1, 1]} : vector<1x4x130xf32> to vector<1x4x128xf32>
    %8 = vector.shape_cast %7 : vector<1x4x128xf32> to vector<4x128xf32>
    %9 = vector.extract_strided_slice %4 {offsets = [0, 0, 2], sizes = [1, 4, 128], strides = [1, 1, 1]} : vector<1x4x130xf32> to vector<1x4x128xf32>
    %10 = vector.shape_cast %9 : vector<1x4x128xf32> to vector<4x128xf32>
    %11 = tpu.concatenate %6, %8, %10 in 0 : vector<4x128xf32>, vector<4x128xf32>, vector<4x128xf32> -> vector<12x128xf32>
    %c0_8 = arith.constant 0 : index
    %c0_9 = arith.constant 0 : index
    %12 = vector.load %arg4[%c0_8, %c0_9] : memref<8x12xf32, #tpu.memory_space<vmem>>, vector<8x12xf32>
    %cst = arith.constant dense<0.000000e+00> : vector<8x128xf32>
    %13 = tpu.matmul %12, %11, %cst {dimension_numbers = #tpu.dot_dimension_numbers<[1], [0], [0], [1], [0, 0, 1, 1], [], []>} : vector<8x12xf32>, vector<12x128xf32>, vector<8x128xf32> -> vector<8x128xf32>
    %c0_10 = arith.constant 0 : index
    %c0_11 = arith.constant 0 : index
    %14 = vector.load %arg5[%c0_10, %c0_11] : memref<8x2xf32, #tpu.memory_space<vmem>>, vector<8x2xf32>
    %15 = vector.extract_strided_slice %14 {offsets = [0, 0], sizes = [8, 1], strides = [1, 1]} : vector<8x2xf32> to vector<8x1xf32>
    %16 = vector.broadcast %15 : vector<8x1xf32> to vector<8x128xf32>
    %17 = arith.mulf %13, %16 : vector<8x128xf32>
    %18 = vector.extract_strided_slice %14 {offsets = [0, 1], sizes = [8, 1], strides = [1, 1]} : vector<8x2xf32> to vector<8x1xf32>
    %19 = vector.broadcast %18 : vector<8x1xf32> to vector<8x128xf32>
    %20 = arith.addf %17, %19 : vector<8x128xf32>
    %cst_12 = arith.constant 0.000000e+00 : f32
    %21 = vector.broadcast %cst_12 : f32 to vector<8x128xf32>
    %22 = arith.maximumf %20, %21 : vector<8x128xf32>
    %c0_13 = arith.constant 0 : index
    %c0_14 = arith.constant 0 : index
    %c0_15 = arith.constant 0 : index
    %23 = vector.load %arg6[%c0_13, %c0_14, %c0_15] : memref<1x8x128xf32, #tpu.memory_space<vmem>>, vector<1x8x128xf32>
    %24 = vector.shape_cast %23 : vector<1x8x128xf32> to vector<8x128xf32>
    %25 = vector.shape_cast %22 : vector<8x128xf32> to vector<1x8x128xf32>
    tpu.vector_store %arg6[%c0_13, %c0_14, %c0_15], %25 {strides = array<i32>} : memref<1x8x128xf32, #tpu.memory_space<vmem>>, vector<1x8x128xf32>,
    return
  }
  func.func @transform_0(%arg0: i32, %arg1: i32) -> (i32, i32, i32, i32) {
    %c0_i32 = arith.constant 0 : i32
    %c0_i32_0 = arith.constant 0 : i32
    %c0_i32_1 = arith.constant 0 : i32
    return %arg0, %c0_i32, %c0_i32_0, %arg1 : i32, i32, i32, i32
  }
  func.func @transform_1(%arg0: i32, %arg1: i32) -> (i32, i32, i32, i32, i32) {
    %c0_i32 = arith.constant 0 : i32
    %c0_i32_0 = arith.constant 0 : i32
    %c0_i32_1 = arith.constant 0 : i32
    %c0_i32_2 = arith.constant 0 : i32
    return %arg0, %arg1, %c0_i32, %c0_i32_0, %c0_i32_1 : i32, i32, i32, i32, i32
  }
  func.func @transform_2(%arg0: i32, %arg1: i32) -> (i32, i32) {
    %c0_i32 = arith.constant 0 : i32
    %c0_i32_0 = arith.constant 0 : i32
    %c0_i32_1 = arith.constant 0 : i32
    return %c0_i32, %c0_i32_0 : i32, i32
  }
  func.func @transform_3(%arg0: i32, %arg1: i32) -> (i32, i32) {
    %c0_i32 = arith.constant 0 : i32
    %c0_i32_0 = arith.constant 0 : i32
    %c0_i32_1 = arith.constant 0 : i32
    return %c0_i32, %c0_i32_0 : i32, i32
  }
  func.func @transform_4(%arg0: i32, %arg1: i32) -> (i32, i32, i32) {
    %c0_i32 = arith.constant 0 : i32
    %c0_i32_0 = arith.constant 0 : i32
    return %arg0, %c0_i32, %arg1 : i32, i32, i32
  }
}

</mosaic_0001>

<llo_original>
// kernel: conv_bn_activate_forward.2
$region0: #{conv_bn_activate_forward.2}
  #allocation0 [shape = 'u32[]', space=smem, size = 0x4, offset = 0x4, fixed_abs, tag = 'smem constant byte address 0x4 - core index']
  #allocation1 [shape = 'u32[72,128]{1,0:T(1,128)}', space=vmem, size = 0x9000, scoped, tag = 'internal scratch']
  %s0 = inlined_call_operand.vmem [shape: f32[2,1,4,128], index: 0, kind: input, shape index: {}]
  %s1 = inlined_call_operand.vmem [shape: f32[2,1,1,4,2], index: 1, kind: input, shape index: {}]
  %s2 = inlined_call_operand.vmem [shape: f32[8,12], index: 2, kind: input, shape index: {}]
  %s3 = inlined_call_operand.vmem [shape: f32[2,8,1], index: 3, kind: output, shape index: {0}]
  %s4 = inlined_call_operand.vmem [shape: f32[2,8,1], index: 4, kind: output, shape index: {1}]
  %5 = xla_tuple %s3, %s4
  %s6 = sld [smem:[#allocation0]]
  $region57: #{conv_bn_activate_forward.2} parent=0
    _
  %s8 = ssub.s32 1, %s6
  %s9 = scalar_select 0, %s8, %s6
  loop: start=0, step=1, limit=4
  $region2: #{conv_bn_activate_forward.2} parent=0 // loop_pre_header
    _
  $region3: #{conv_bn_activate_forward.2} parent=0 // loop_header
    %s11 = sphi 0, %s15
    %p12 = scmp.ge.s32.totalorder %s11, 4
    %s18 = sphi 0, %s30
    %s19 = sphi 0, %s26
    %s20 = sphi 0, %s18
    %s21 = sphi 0, %s19
    %s22 = sphi 0, %s20
    %s23 = sphi 0, %s21
    %s35 = sphi 0, %s37
    %s38 = sphi 0, %s35
    %s39 = sphi 0, %s38
    %s55 = sphi 0, %s39
    %s63 = sphi 0, %s65
    %s66 = sphi 0, %s63
    %s67 = sphi 0, %s66
    %s83 = sphi 0, %s67
    %s87 = sphi 0, %s87
    %s89 = sphi 0, %s87
    %s90 = sphi 0, %s89
    %s104 = sphi 0, %s90
    %s110 = sphi 0, %s112
    %s113 = sphi 0, %s110
    %s114 = sphi 0, %s113
    %s130 = sphi 0, %s114
    %s136 = sphi 0, %s138
    %s139 = sphi 0, %s136
    %s140 = sphi 0, %s139
    %s156 = sphi 0, %s140
  $region4: #{conv_bn_activate_forward.2} parent=0 // loop_header_branch
    %14 = sbr.rel (%p12) target = $region8
  $region5: #{conv_bn_activate_forward.2} parent=0 // loop_body
    %s16 = ssub.s32 %s11, 1
    %s17 = ssub.s32 %s11, 2
    %s24 = sadd.s32 1, %s19
    %p25 = scmp.ge.s32.totalorder %s24, 1
    %s26 = scalar_select %p25, 0, %s24
    %s27 = sadd.s32 1, %s18
    %s28 = scalar_select %p25, %s27, %s18
    %p29 = scmp.ge.s32.totalorder %s28, 2
    %s30 = scalar_select %p29, 0, %s28
    %s31 = ssub.s32 %s18, %s30
    %s32 = ssub.s32 %s19, %s26
    %s33 = sor.u32 %s31, %s32
    %p34 = scmp.eq.s32.totalorder %s33, 0
    %s36 = sadd.s32 %s35, 1
    %s37 = scalar_select %p34, %s35, %s36
    %p40 = pneg %p34
    %p41 = scmp.eq.s32.totalorder %s11, 1
    %p42 = por %p40, %p41
    %p43 = scmp.ne.s32.totalorder %s35, %s38
    %p44 = scmp.eq.s32.totalorder %s11, 0
    %p45 = por %p43, %p44
    %p46 = scmp.ne.s32.totalorder %s35, %s38
    %p47 = scmp.eq.s32.totalorder %s16, 1
    %p48 = por %p46, %p47
    %p49 = scmp.ne.s32.totalorder %s38, %s39
    %p50 = scmp.eq.s32.totalorder %s16, 0
    %p51 = por %p49, %p50
    %p52 = scmp.ne.s32.totalorder %s38, %s39
    %p53 = scmp.eq.s32.totalorder %s17, 1
    %p54 = por %p52, %p53
    %p56 = scmp.ne.s32.totalorder %s39, %s55
    %p57 = scmp.eq.s32.totalorder %s17, 0
    %p58 = por %p56, %p57
    %s59 = ssub.s32 %s18, %s30
    %s60 = ssub.s32 %s19, %s26
    %s61 = sor.u32 %s59, %s60
    %p62 = scmp.eq.s32.totalorder %s61, 0
    %s64 = sadd.s32 %s63, 1
    %s65 = scalar_select %p62, %s63, %s64
    %p68 = pneg %p62
    %p69 = scmp.eq.s32.totalorder %s11, 1
    %p70 = por %p68, %p69
    %p71 = scmp.ne.s32.totalorder %s63, %s66
    %p72 = scmp.eq.s32.totalorder %s11, 0
    %p73 = por %p71, %p72
    %p74 = scmp.ne.s32.totalorder %s63, %s66
    %p75 = scmp.eq.s32.totalorder %s16, 1
    %p76 = por %p74, %p75
    %p77 = scmp.ne.s32.totalorder %s66, %s67
    %p78 = scmp.eq.s32.totalorder %s16, 0
    %p79 = por %p77, %p78
    %p80 = scmp.ne.s32.totalorder %s66, %s67
    %p81 = scmp.eq.s32.totalorder %s17, 1
    %p82 = por %p80, %p81
    %p84 = scmp.ne.s32.totalorder %s67, %s83
    %p85 = scmp.eq.s32.totalorder %s17, 0
    %p86 = por %p84, %p85
    %s88 = sadd.s32 %s87, 1
    %p91 = scmp.eq.s32.totalorder %s11, 1
    %p92 = scmp.ne.s32.totalorder %s87, %s89
    %p93 = scmp.eq.s32.totalorder %s11, 0
    %p94 = por %p92, %p93
    %p95 = scmp.ne.s32.totalorder %s87, %s89
    %p96 = scmp.eq.s32.totalorder %s16, 1
    %p97 = por %p95, %p96
    %p98 = scmp.ne.s32.totalorder %s89, %s90
    %p99 = scmp.eq.s32.totalorder %s16, 0
    %p100 = por %p98, %p99
    %p101 = scmp.ne.s32.totalorder %s89, %s90
    %p102 = scmp.eq.s32.totalorder %s17, 1
    %p103 = por %p101, %p102
    %p105 = scmp.ne.s32.totalorder %s90, %s104
    %p106 = scmp.eq.s32.totalorder %s17, 0
    %p107 = por %p105, %p106
    %s108 = ssub.s32 %s18, %s30
    %p109 = scmp.eq.s32.totalorder %s108, 0
    %s111 = sadd.s32 %s110, 1
    %s112 = scalar_select %p109, %s110, %s111
    %p115 = pneg %p109
    %p116 = scmp.eq.s32.totalorder %s11, 1
    %p117 = por %p115, %p116
    %p118 = scmp.ne.s32.totalorder %s110, %s113
    %p119 = scmp.eq.s32.totalorder %s11, 0
    %p120 = por %p118, %p119
    %p121 = scmp.ne.s32.totalorder %s110, %s113
    %p122 = scmp.eq.s32.totalorder %s16, 1
    %p123 = por %p121, %p122
    %p124 = scmp.ne.s32.totalorder %s113, %s114
    %p125 = scmp.eq.s32.totalorder %s16, 0
    %p126 = por %p124, %p125
    %p127 = scmp.ne.s32.totalorder %s113, %s114
    %p128 = scmp.eq.s32.totalorder %s17, 1
    %p129 = por %p127, %p128
    %p131 = scmp.ne.s32.totalorder %s114, %s130
    %p132 = scmp.eq.s32.totalorder %s17, 0
    %p133 = por %p131, %p132
    %s134 = ssub.s32 %s18, %s30
    %p135 = scmp.eq.s32.totalorder %s134, 0
    %s137 = sadd.s32 %s136, 1
    %s138 = scalar_select %p135, %s136, %s137
    %p141 = pneg %p135
    %p142 = scmp.eq.s32.totalorder %s11, 1
    %p143 = por %p141, %p142
    %p144 = scmp.ne.s32.totalorder %s136, %s139
    %p145 = scmp.eq.s32.totalorder %s11, 0
    %p146 = por %p144, %p145
    %p147 = scmp.ne.s32.totalorder %s136, %s139
    %p148 = scmp.eq.s32.totalorder %s16, 1
    %p149 = por %p147, %p148
    %p150 = scmp.ne.s32.totalorder %s139, %s140
    %p151 = scmp.eq.s32.totalorder %s16, 0
    %p152 = por %p150, %p151
    %p153 = scmp.ne.s32.totalorder %s139, %s140
    %p154 = scmp.eq.s32.totalorder %s17, 1
    %p155 = por %p153, %p154
    %p157 = scmp.ne.s32.totalorder %s140, %s156
    %p158 = scmp.eq.s32.totalorder %s17, 0
    %p159 = por %p157, %p158
    %p160 = scmp.le.s32.totalorder 1, %s11
    %p161 = scmp.lt.s32.totalorder %s11, 3
    %p162 = pnand %p160, %p161
    %p163 = pneg %p162
    // Predicated region
    $region9: #{conv_bn_activate_forward.2} parent=5 // pred_check
      _
    $region10: #{conv_bn_activate_forward.2} parent=5 // pred_check_branch
      %165 = sbr.rel (%p162) target = $region12
    $region11: #{conv_bn_activate_forward.2} parent=5 // pred_region
      %s166 = ssub.s32 %s11, 1
      // Predicated region
      $region13: #{conv_bn_activate_forward.2} parent=11 // pred_check
        %p167 = pneg %p100
      $region14: #{conv_bn_activate_forward.2} parent=11 // pred_check_branch
        %169 = sbr.rel (%p167) target = $region16
      $region15: #{conv_bn_activate_forward.2} parent=11 // pred_region
        _
      $region16: #{conv_bn_activate_forward.2} parent=11 // pred_fallthru
        _
    $region12: #{conv_bn_activate_forward.2} parent=5 // pred_fallthru
      _
    %p170 = scmp.lt.s32.totalorder %s11, 2
    // Predicated region
    $region17: #{conv_bn_activate_forward.2} parent=5 // pred_check
      %p171 = pneg %p170
    $region18: #{conv_bn_activate_forward.2} parent=5 // pred_check_branch
      %173 = sbr.rel (%p171) target = $region20
    $region19: #{conv_bn_activate_forward.2} parent=5 // pred_region
      // Predicated region
      $region21: #{conv_bn_activate_forward.2} parent=19 // pred_check
        %p174 = pneg %p45
      $region22: #{conv_bn_activate_forward.2} parent=19 // pred_check_branch
        %176 = sbr.rel (%p174) target = $region24
      $region23: #{conv_bn_activate_forward.2} parent=19 // pred_region
        %p177 = scmp.lt.s32.totalorder %s18, 1
        %s178 = scalar_select %p177, %s18, 1
        %p179 = scmp.lt.s32.totalorder %s19, 0
        %s180 = scalar_select %p179, %s19, 0
        %s181 = sadd.s32 %s180, %s178
        %s182 = smul.addr %s181, 4
        %s183 = scalar_lea.vmem %s0, %s182
      $region24: #{conv_bn_activate_forward.2} parent=19 // pred_fallthru
        _
      // Predicated region
      $region25: #{conv_bn_activate_forward.2} parent=19 // pred_check
        %p184 = pneg %p73
      $region26: #{conv_bn_activate_forward.2} parent=19 // pred_check_branch
        %186 = sbr.rel (%p184) target = $region28
      $region27: #{conv_bn_activate_forward.2} parent=19 // pred_region
        %p187 = scmp.lt.s32.totalorder %s18, 1
        %s188 = scalar_select %p187, %s18, 1
        %p189 = scmp.lt.s32.totalorder %s19, 0
        %s190 = scalar_select %p189, %s19, 0
        %s191 = sadd.s32 %s190, %s188
        %s192 = smul.addr %s191, 4
        %s193 = scalar_lea.vmem %s1, %s192
      $region28: #{conv_bn_activate_forward.2} parent=19 // pred_fallthru
        _
    $region20: #{conv_bn_activate_forward.2} parent=5 // pred_fallthru
      _
    %p194 = scmp.le.s32.totalorder 1, %s11
    %p195 = scmp.lt.s32.totalorder %s11, 3
    %p196 = pnand %p194, %p195
    %p197 = pneg %p196
    // Predicated region
    $region29: #{conv_bn_activate_forward.2} parent=5 // pred_check
      _
    $region30: #{conv_bn_activate_forward.2} parent=5 // pred_check_branch
      %199 = sbr.rel (%p196) target = $region32
    $region31: #{conv_bn_activate_forward.2} parent=5 // pred_region
      %s200 = ssub.s32 %s11, 1
      %p201 = scmp.lt.s32.totalorder %s20, 1
      %s202 = scalar_select %p201, %s20, 1
      %p203 = scmp.lt.s32.totalorder %s21, 0
      %s204 = scalar_select %p203, %s21, 0
      %s205 = sadd.s32 %s204, %s202
      %s206 = smul.addr %s205, 4
      %s207 = scalar_lea.vmem %s0, %s206
      %p208 = pneg %p51
      %p209 = pneg %p48
      %p210 = scmp.lt.s32.totalorder %s20, 1
      %s211 = scalar_select %p210, %s20, 1
      %p212 = scmp.lt.s32.totalorder %s21, 0
      %s213 = scalar_select %p212, %s21, 0
      %s214 = sadd.s32 %s213, %s211
      %s215 = smul.addr %s214, 4
      %s216 = scalar_lea.vmem %s1, %s215
      %p217 = pneg %p79
      %p218 = pneg %p76
      %p219 = pneg %p100
      %p220 = pneg %p97
      %p221 = pneg %p126
      %p222 = pneg %p123
      %p223 = scmp.lt.s32.totalorder %s20, 1
      %s224 = scalar_select %p223, %s20, 1
      %s225 = smul.addr %s224, 8
      %s226 = scalar_lea.vmem %s3, %s225
      %p227 = pneg %p152
      %p228 = pneg %p149
      %p229 = scmp.lt.s32.totalorder %s20, 1
      %s230 = scalar_select %p229, %s20, 1
      %s231 = smul.addr %s230, 8
      %s232 = scalar_lea.vmem %s4, %s231
      %p233 = scmp.lt.s32.totalorder %s20, 1
      %s234 = scalar_select %p233, %s20, 1
      %p235 = scmp.lt.s32.totalorder %s21, 0
      %s236 = scalar_select %p235, %s21, 0
      %s237 = sadd.s32 %s236, %s234
      %s238 = smul.addr %s237, 4
      %s239 = scalar_lea.vmem %s0, %s238
      %p240 = scmp.lt.s32.totalorder %s20, 1
      %s241 = scalar_select %p240, %s20, 1
      %p242 = scmp.lt.s32.totalorder %s21, 0
      %s243 = scalar_select %p242, %s21, 0
      %s244 = sadd.s32 %s243, %s241
      %s245 = smul.addr %s244, 4
      %s246 = scalar_lea.vmem %s1, %s245
      %p247 = scmp.lt.s32.totalorder %s20, 1
      %s248 = scalar_select %p247, %s20, 1
      %s249 = smul.addr %s248, 8
      %s250 = scalar_lea.vmem %s3, %s249
      %p251 = scmp.lt.s32.totalorder %s20, 1
      %s252 = scalar_select %p251, %s20, 1
      %s253 = smul.addr %s252, 8
      %s254 = scalar_lea.vmem %s4, %s253
      %p255 = scmp.eq.s32.totalorder %s21, 0
      // Predicated region
      $region33: #{conv_bn_activate_forward.2} parent=31 // pred_check
        %p256 = pneg %p255
      $region34: #{conv_bn_activate_forward.2} parent=31 // pred_check_branch
        %258 = sbr.rel (%p256) target = $region36
      $region35: #{conv_bn_activate_forward.2} parent=31 // pred_region
        %vm259 = vcmask 7168
        %260 = vst.msk [vmem:[%s250] sm:$0xff] %vm259, 0.0
        %261 = vst.msk [vmem:[%s254] sm:$0xff] %vm259, 0.0
      $region36: #{conv_bn_activate_forward.2} parent=31 // pred_fallthru
        _
      %v262 = vld [vmem:[%s239] sm:$0xf]
      %v263 = vld [vmem:[%s246] sm:$0xf]
      %v266 = vrot.slane %v262, 4
      %v267 = vrot.slane %v263, 4
      %268 = vrot.lane.b32.xlu0 %v266, 127
      %v269 = vpop.permute.xlu0 %268
      %270 = vrot.lane.b32.xlu0 %v267, 127
      %v271 = vpop.permute.xlu0 %270
      %vm272 = vcmask 1039360
      %v273 = vsel %vm272, %v269, %v271
      %275 = vrot.lane.b32.xlu0 %v262, 126
      %v276 = vpop.permute.xlu0 %275
      %277 = vrot.lane.b32.xlu0 %v263, 126
      %v278 = vpop.permute.xlu0 %277
      %vm279 = vcmask 1031168
      %v280 = vsel %vm279, %v276, %v278
      %vm281 = vcmask 1043456
      %v282 = vsel %vm281, %v262, %v273
      %v283 = vld [vmem:[%s2] sm:$0xff]
      %vm284 = vcmask 97280
      %v286 = vsel %vm284, %v283, 0
      %v288 = vsel %vm281, %v280, 0
      %290 = vmatpush.msra.mxu0 0.0
      %291 = vmatpush.msra.mxu0 0.0
      %292 = vmatpush.msra.mxu0 0.0
      %293 = vmatpush.msra.mxu0 0.0
      %294 = vmatpush.msra.mxu0 0.0
      %295 = vmatpush.msra.mxu0 0.0
      %296 = vmatpush.msra.mxu0 0.0
      %297 = vmatpush.msra.mxu0 0.0
      %298 = vmatpush.msra.mxu0 0.0
      %299 = vmatpush.msra.mxu0 0.0
      %300 = vmatpush.msra.mxu0 0.0
      %301 = vmatpush.msra.mxu0 0.0
      %302 = vmatpush.msra.mxu0 0.0
      %303 = vmatpush.msra.mxu0 0.0
      %304 = vmatpush.msra.mxu0 %v288
      %305 = vmatpush.msra.mxu0 %v282
      %306 = vmatmul.f32.gmra.mxu0 %v286
      %v307 = vpop.f32.mrf.mxu0
      %v308 = vadd.f32 0.0, %v307
      %309 = vdwg.mxu0
      %s310 = smul.u32 %s21, 128
      %v311 = vlaneseq
      %v312 = vand.u32 %v311, 127
      %v313 = vstv %s310
      %v314 = vadd.s32 %v313, %v312
      %vm315 = vcmp.lt.s32.totalorder %v314, 16
      %v316 = vsel %vm315, %v308, 0.0
      %v317 = vld [vmem:[%s250] sm:$0xff]
      %318 = vadd.xlane.f32.xlu0 %v316
      %v319 = vpop.xlane.xlu0 %318
      %v320 = vadd.f32 %v317, %v319
      %vm321 = vcmask 7168
      %322 = vst.msk [vmem:[%s250] sm:$0xff] %vm321, %v320
      %v323 = vld [vmem:[%s254] sm:$0xff]
      %v324 = vmul.f32 %v316, %v316
      %325 = vadd.xlane.f32.xlu0 %v324
      %v326 = vpop.xlane.xlu0 %325
      %v327 = vadd.f32 %v323, %v326
      %328 = vst.msk [vmem:[%s254] sm:$0xff] %vm321, %v327
      %p329 = scmp.lt.s32.totalorder %s20, 1
      %s330 = scalar_select %p329, %s20, 1
      %s331 = smul.addr %s330, 8
      %s332 = scalar_lea.vmem %s3, %s331
      %p333 = scmp.lt.s32.totalorder %s20, 1
      %s334 = scalar_select %p333, %s20, 1
      %s335 = smul.addr %s334, 8
      %s336 = scalar_lea.vmem %s4, %s335
      // Predicated region
      $region37: #{conv_bn_activate_forward.2} parent=31 // pred_check
        %p337 = pneg %p123
      $region38: #{conv_bn_activate_forward.2} parent=31 // pred_check_branch
        %339 = sbr.rel (%p337) target = $region40
      $region39: #{conv_bn_activate_forward.2} parent=31 // pred_region
        _
      $region40: #{conv_bn_activate_forward.2} parent=31 // pred_fallthru
        _
      // Predicated region
      $region41: #{conv_bn_activate_forward.2} parent=31 // pred_check
        %p340 = pneg %p149
      $region42: #{conv_bn_activate_forward.2} parent=31 // pred_check_branch
        %342 = sbr.rel (%p340) target = $region44
      $region43: #{conv_bn_activate_forward.2} parent=31 // pred_region
        _
      $region44: #{conv_bn_activate_forward.2} parent=31 // pred_fallthru
        _
    $region32: #{conv_bn_activate_forward.2} parent=5 // pred_fallthru
      _
    %p343 = scmp.le.s32.totalorder 2, %s11
    // Predicated region
    $region45: #{conv_bn_activate_forward.2} parent=5 // pred_check
      %p344 = pneg %p343
    $region46: #{conv_bn_activate_forward.2} parent=5 // pred_check_branch
      %346 = sbr.rel (%p344) target = $region48
    $region47: #{conv_bn_activate_forward.2} parent=5 // pred_region
      %s347 = ssub.s32 %s11, 2
      // Predicated region
      $region49: #{conv_bn_activate_forward.2} parent=47 // pred_check
        %p348 = pneg %p129
      $region50: #{conv_bn_activate_forward.2} parent=47 // pred_check_branch
        %350 = sbr.rel (%p348) target = $region52
      $region51: #{conv_bn_activate_forward.2} parent=47 // pred_region
        %p351 = scmp.lt.s32.totalorder %s22, 1
        %s352 = scalar_select %p351, %s22, 1
        %s353 = smul.addr %s352, 8
        %s354 = scalar_lea.vmem %s3, %s353
      $region52: #{conv_bn_activate_forward.2} parent=47 // pred_fallthru
        _
      // Predicated region
      $region53: #{conv_bn_activate_forward.2} parent=47 // pred_check
        %p355 = pneg %p155
      $region54: #{conv_bn_activate_forward.2} parent=47 // pred_check_branch
        %357 = sbr.rel (%p355) target = $region56
      $region55: #{conv_bn_activate_forward.2} parent=47 // pred_region
        %p358 = scmp.lt.s32.totalorder %s22, 1
        %s359 = scalar_select %p358, %s22, 1
        %s360 = smul.addr %s359, 8
        %s361 = scalar_lea.vmem %s4, %s360
      $region56: #{conv_bn_activate_forward.2} parent=47 // pred_fallthru
        _
    $region48: #{conv_bn_activate_forward.2} parent=5 // pred_fallthru
      _
  $region6: #{conv_bn_activate_forward.2} parent=0 // loop_footer
    %s15 = sadd.s32 1, %s11
  $region7: #{conv_bn_activate_forward.2} parent=0 // loop_footer_branch
    %10 = sbr.rel target = $region3
  $region8: #{conv_bn_activate_forward.2} parent=0 // loop_exit
    _

// kernel: conv_bn_activate_forward.3
$region0: #{conv_bn_activate_forward.3}
  #allocation0 [shape = 'u32[]', space=smem, size = 0x4, offset = 0x4, fixed_abs, tag = 'smem constant byte address 0x4 - core index']
  #allocation1 [shape = 'u32[72,128]{1,0:T(1,128)}', space=vmem, size = 0x9000, scoped, tag = 'internal scratch']
  %s0 = inlined_call_operand.vmem [shape: f32[2,1,4,128], index: 0, kind: input, shape index: {}]
  %s1 = inlined_call_operand.vmem [shape: f32[2,1,1,4,2], index: 1, kind: input, shape index: {}]
  %s2 = inlined_call_operand.vmem [shape: f32[8,12], index: 2, kind: input, shape index: {}]
  %s3 = inlined_call_operand.vmem [shape: f32[8,2], index: 3, kind: input, shape index: {}]
  %s4 = inlined_call_operand.hbm [shape: f32[2,8,128], index: 4, kind: output, shape index: {}]
  %s5 = sld [smem:[#allocation0]]
  $region49: #{conv_bn_activate_forward.3} parent=0
    _
  %s7 = ssub.s32 1, %s5
  %s8 = scalar_select 0, %s7, %s5
  $region1: #{conv_bn_activate_forward.3} parent=0
    #allocation2 [shape = 'u8[8192]{0}', space=vmem, size = 0x2000, scoped, tag = 'output window, operand 0']
    #allocation3 [shape = 's32[2]{0}', space=sflag, size = 0x8, scoped, tag = 'scoped memory for conv_bn_activate_forward.3']
    %9 = vsyncpa [#allocation3], 0
    %s10 = scalar_lea.sflag [#allocation3], 1
    %11 = vsyncpa %s10, 0
    loop: start=0, step=1, limit=4
    $region2: #{conv_bn_activate_forward.3} parent=1 // loop_pre_header
      _
    $region3: #{conv_bn_activate_forward.3} parent=1 // loop_header
      %s13 = sphi 0, %s17
      %p14 = scmp.ge.s32.totalorder %s13, 4
      %s20 = sphi 0, %s32
      %s21 = sphi 0, %s28
      %s22 = sphi 0, %s20
      %s23 = sphi 0, %s21
      %s24 = sphi 0, %s22
      %s25 = sphi 0, %s23
      %s37 = sphi 0, %s39
      %s40 = sphi 0, %s37
      %s41 = sphi 0, %s40
      %s57 = sphi 0, %s41
      %s65 = sphi 0, %s67
      %s68 = sphi 0, %s65
      %s69 = sphi 0, %s68
      %s85 = sphi 0, %s69
      %s89 = sphi 0, %s89
      %s91 = sphi 0, %s89
      %s92 = sphi 0, %s91
      %s106 = sphi 0, %s92
      %s110 = sphi 0, %s110
      %s112 = sphi 0, %s110
      %s113 = sphi 0, %s112
      %s127 = sphi 0, %s113
      %s135 = sphi 0, %s137
      %s138 = sphi 0, %s135
      %s139 = sphi 0, %s138
      %s155 = sphi 0, %s139
    $region4: #{conv_bn_activate_forward.3} parent=1 // loop_header_branch
      %16 = sbr.rel (%p14) target = $region8
    $region5: #{conv_bn_activate_forward.3} parent=1 // loop_body
      %s18 = ssub.s32 %s13, 1
      %s19 = ssub.s32 %s13, 2
      %s26 = sadd.s32 1, %s21
      %p27 = scmp.ge.s32.totalorder %s26, 1
      %s28 = scalar_select %p27, 0, %s26
      %s29 = sadd.s32 1, %s20
      %s30 = scalar_select %p27, %s29, %s20
      %p31 = scmp.ge.s32.totalorder %s30, 2
      %s32 = scalar_select %p31, 0, %s30
      %s33 = ssub.s32 %s20, %s32
      %s34 = ssub.s32 %s21, %s28
      %s35 = sor.u32 %s33, %s34
      %p36 = scmp.eq.s32.totalorder %s35, 0
      %s38 = sadd.s32 %s37, 1
      %s39 = scalar_select %p36, %s37, %s38
      %p42 = pneg %p36
      %p43 = scmp.eq.s32.totalorder %s13, 1
      %p44 = por %p42, %p43
      %p45 = scmp.ne.s32.totalorder %s37, %s40
      %p46 = scmp.eq.s32.totalorder %s13, 0
      %p47 = por %p45, %p46
      %p48 = scmp.ne.s32.totalorder %s37, %s40
      %p49 = scmp.eq.s32.totalorder %s18, 1
      %p50 = por %p48, %p49
      %p51 = scmp.ne.s32.totalorder %s40, %s41
      %p52 = scmp.eq.s32.totalorder %s18, 0
      %p53 = por %p51, %p52
      %p54 = scmp.ne.s32.totalorder %s40, %s41
      %p55 = scmp.eq.s32.totalorder %s19, 1
      %p56 = por %p54, %p55
      %p58 = scmp.ne.s32.totalorder %s41, %s57
      %p59 = scmp.eq.s32.totalorder %s19, 0
      %p60 = por %p58, %p59
      %s61 = ssub.s32 %s20, %s32
      %s62 = ssub.s32 %s21, %s28
      %s63 = sor.u32 %s61, %s62
      %p64 = scmp.eq.s32.totalorder %s63, 0
      %s66 = sadd.s32 %s65, 1
      %s67 = scalar_select %p64, %s65, %s66
      %p70 = pneg %p64
      %p71 = scmp.eq.s32.totalorder %s13, 1
      %p72 = por %p70, %p71
      %p73 = scmp.ne.s32.totalorder %s65, %s68
      %p74 = scmp.eq.s32.totalorder %s13, 0
      %p75 = por %p73, %p74
      %p76 = scmp.ne.s32.totalorder %s65, %s68
      %p77 = scmp.eq.s32.totalorder %s18, 1
      %p78 = por %p76, %p77
      %p79 = scmp.ne.s32.totalorder %s68, %s69
      %p80 = scmp.eq.s32.totalorder %s18, 0
      %p81 = por %p79, %p80
      %p82 = scmp.ne.s32.totalorder %s68, %s69
      %p83 = scmp.eq.s32.totalorder %s19, 1
      %p84 = por %p82, %p83
      %p86 = scmp.ne.s32.totalorder %s69, %s85
      %p87 = scmp.eq.s32.totalorder %s19, 0
      %p88 = por %p86, %p87
      %s90 = sadd.s32 %s89, 1
      %p93 = scmp.eq.s32.totalorder %s13, 1
      %p94 = scmp.ne.s32.totalorder %s89, %s91
      %p95 = scmp.eq.s32.totalorder %s13, 0
      %p96 = por %p94, %p95
      %p97 = scmp.ne.s32.totalorder %s89, %s91
      %p98 = scmp.eq.s32.totalorder %s18, 1
      %p99 = por %p97, %p98
      %p100 = scmp.ne.s32.totalorder %s91, %s92
      %p101 = scmp.eq.s32.totalorder %s18, 0
      %p102 = por %p100, %p101
      %p103 = scmp.ne.s32.totalorder %s91, %s92
      %p104 = scmp.eq.s32.totalorder %s19, 1
      %p105 = por %p103, %p104
      %p107 = scmp.ne.s32.totalorder %s92, %s106
      %p108 = scmp.eq.s32.totalorder %s19, 0
      %p109 = por %p107, %p108
      %s111 = sadd.s32 %s110, 1
      %p114 = scmp.eq.s32.totalorder %s13, 1
      %p115 = scmp.ne.s32.totalorder %s110, %s112
      %p116 = scmp.eq.s32.totalorder %s13, 0
      %p117 = por %p115, %p116
      %p118 = scmp.ne.s32.totalorder %s110, %s112
      %p119 = scmp.eq.s32.totalorder %s18, 1
      %p120 = por %p118, %p119
      %p121 = scmp.ne.s32.totalorder %s112, %s113
      %p122 = scmp.eq.s32.totalorder %s18, 0
      %p123 = por %p121, %p122
      %p124 = scmp.ne.s32.totalorder %s112, %s113
      %p125 = scmp.eq.s32.totalorder %s19, 1
      %p126 = por %p124, %p125
      %p128 = scmp.ne.s32.totalorder %s113, %s127
      %p129 = scmp.eq.s32.totalorder %s19, 0
      %p130 = por %p128, %p129
      %s131 = ssub.s32 %s20, %s32
      %s132 = ssub.s32 %s21, %s28
      %s133 = sor.u32 %s131, %s132
      %p134 = scmp.eq.s32.totalorder %s133, 0
      %s136 = sadd.s32 %s135, 1
      %s137 = scalar_select %p134, %s135, %s136
      %p140 = pneg %p134
      %p141 = scmp.eq.s32.totalorder %s13, 1
      %p142 = por %p140, %p141
      %p143 = scmp.ne.s32.totalorder %s135, %s138
      %p144 = scmp.eq.s32.totalorder %s13, 0
      %p145 = por %p143, %p144
      %p146 = scmp.ne.s32.totalorder %s135, %s138
      %p147 = scmp.eq.s32.totalorder %s18, 1
      %p148 = por %p146, %p147
      %p149 = scmp.ne.s32.totalorder %s138, %s139
      %p150 = scmp.eq.s32.totalorder %s18, 0
      %p151 = por %p149, %p150
      %p152 = scmp.ne.s32.totalorder %s138, %s139
      %p153 = scmp.eq.s32.totalorder %s19, 1
      %p154 = por %p152, %p153
      %p156 = scmp.ne.s32.totalorder %s139, %s155
      %p157 = scmp.eq.s32.totalorder %s19, 0
      %p158 = por %p156, %p157
      %p159 = scmp.le.s32.totalorder 1, %s13
      %p160 = scmp.lt.s32.totalorder %s13, 3
      %p161 = pnand %p159, %p160
      %p162 = pneg %p161
      // Predicated region
      $region9: #{conv_bn_activate_forward.3} parent=5 // pred_check
        _
      $region10: #{conv_bn_activate_forward.3} parent=5 // pred_check_branch
        %164 = sbr.rel (%p161) target = $region12
      $region11: #{conv_bn_activate_forward.3} parent=5 // pred_region
        %s165 = ssub.s32 %s13, 1
        // Predicated region
        $region13: #{conv_bn_activate_forward.3} parent=11 // pred_check
          %p166 = pneg %p102
        $region14: #{conv_bn_activate_forward.3} parent=11 // pred_check_branch
          %168 = sbr.rel (%p166) target = $region16
        $region15: #{conv_bn_activate_forward.3} parent=11 // pred_region
          _
        $region16: #{conv_bn_activate_forward.3} parent=11 // pred_fallthru
          _
        // Predicated region
        $region17: #{conv_bn_activate_forward.3} parent=11 // pred_check
          %p169 = pneg %p123
        $region18: #{conv_bn_activate_forward.3} parent=11 // pred_check_branch
          %171 = sbr.rel (%p169) target = $region20
        $region19: #{conv_bn_activate_forward.3} parent=11 // pred_region
          _
        $region20: #{conv_bn_activate_forward.3} parent=11 // pred_fallthru
          _
      $region12: #{conv_bn_activate_forward.3} parent=5 // pred_fallthru
        _
      %p172 = scmp.lt.s32.totalorder %s13, 2
      // Predicated region
      $region21: #{conv_bn_activate_forward.3} parent=5 // pred_check
        %p173 = pneg %p172
      $region22: #{conv_bn_activate_forward.3} parent=5 // pred_check_branch
        %175 = sbr.rel (%p173) target = $region24
      $region23: #{conv_bn_activate_forward.3} parent=5 // pred_region
        // Predicated region
        $region25: #{conv_bn_activate_forward.3} parent=23 // pred_check
          %p176 = pneg %p47
        $region26: #{conv_bn_activate_forward.3} parent=23 // pred_check_branch
          %178 = sbr.rel (%p176) target = $region28
        $region27: #{conv_bn_activate_forward.3} parent=23 // pred_region
          %p179 = scmp.lt.s32.totalorder %s20, 1
          %s180 = scalar_select %p179, %s20, 1
          %p181 = scmp.lt.s32.totalorder %s21, 0
          %s182 = scalar_select %p181, %s21, 0
          %s183 = sadd.s32 %s182, %s180
          %s184 = smul.addr %s183, 4
          %s185 = scalar_lea.vmem %s0, %s184
        $region28: #{conv_bn_activate_forward.3} parent=23 // pred_fallthru
          _
        // Predicated region
        $region29: #{conv_bn_activate_forward.3} parent=23 // pred_check
          %p186 = pneg %p75
        $region30: #{conv_bn_activate_forward.3} parent=23 // pred_check_branch
          %188 = sbr.rel (%p186) target = $region32
        $region31: #{conv_bn_activate_forward.3} parent=23 // pred_region
          %p189 = scmp.lt.s32.totalorder %s20, 1
          %s190 = scalar_select %p189, %s20, 1
          %p191 = scmp.lt.s32.totalorder %s21, 0
          %s192 = scalar_select %p191, %s21, 0
          %s193 = sadd.s32 %s192, %s190
          %s194 = smul.addr %s193, 4
          %s195 = scalar_lea.vmem %s1, %s194
        $region32: #{conv_bn_activate_forward.3} parent=23 // pred_fallthru
          _
      $region24: #{conv_bn_activate_forward.3} parent=5 // pred_fallthru
        _
      %p196 = scmp.le.s32.totalorder 1, %s13
      %p197 = scmp.lt.s32.totalorder %s13, 3
      %p198 = pnand %p196, %p197
      %p199 = pneg %p198
      // Predicated region
      $region33: #{conv_bn_activate_forward.3} parent=5 // pred_check
        _
      $region34: #{conv_bn_activate_forward.3} parent=5 // pred_check_branch
        %201 = sbr.rel (%p198) target = $region36
      $region35: #{conv_bn_activate_forward.3} parent=5 // pred_region
        %s202 = ssub.s32 %s13, 1
        %p203 = scmp.lt.s32.totalorder %s22, 1
        %s204 = scalar_select %p203, %s22, 1
        %p205 = scmp.lt.s32.totalorder %s23, 0
        %s206 = scalar_select %p205, %s23, 0
        %s207 = sadd.s32 %s206, %s204
        %s208 = smul.addr %s207, 4
        %s209 = scalar_lea.vmem %s0, %s208
        %p210 = pneg %p53
        %p211 = pneg %p50
        %p212 = scmp.lt.s32.totalorder %s22, 1
        %s213 = scalar_select %p212, %s22, 1
        %p214 = scmp.lt.s32.totalorder %s23, 0
        %s215 = scalar_select %p214, %s23, 0
        %s216 = sadd.s32 %s215, %s213
        %s217 = smul.addr %s216, 4
        %s218 = scalar_lea.vmem %s1, %s217
        %p219 = pneg %p81
        %p220 = pneg %p78
        %p221 = pneg %p102
        %p222 = pneg %p99
        %p223 = pneg %p123
        %p224 = pneg %p120
        %p225 = pneg %p151
        %p226 = pneg %p148
        %s227 = sand.u32 %s138, 1
        %s228 = scalar_lea.sflag [#allocation3], %s227
        %s229 = sand.u32 %s138, 1
        %s230 = smul.addr %s229, 8
        %s231 = scalar_lea.vmem [#allocation2], %s230
        %p232 = scmp.lt.s32.totalorder %s22, 1
        %s233 = scalar_select %p232, %s22, 1
        %p234 = scmp.lt.s32.totalorder %s23, 0
        %s235 = scalar_select %p234, %s23, 0
        %s236 = sadd.s32 %s235, %s233
        %s237 = smul.addr %s236, 4
        %s238 = scalar_lea.vmem %s0, %s237
        %p239 = scmp.lt.s32.totalorder %s22, 1
        %s240 = scalar_select %p239, %s22, 1
        %p241 = scmp.lt.s32.totalorder %s23, 0
        %s242 = scalar_select %p241, %s23, 0
        %s243 = sadd.s32 %s242, %s240
        %s244 = smul.addr %s243, 4
        %s245 = scalar_lea.vmem %s1, %s244
        %v246 = vld [vmem:[%s238] sm:$0xf]
        %v247 = vld [vmem:[%s245] sm:$0xf]
        %v250 = vrot.slane %v246, 4
        %v251 = vrot.slane %v247, 4
        %252 = vrot.lane.b32.xlu0 %v250, 127
        %v253 = vpop.permute.xlu0 %252
        %254 = vrot.lane.b32.xlu0 %v251, 127
        %v255 = vpop.permute.xlu0 %254
        %vm256 = vcmask 1039360
        %v257 = vsel %vm256, %v253, %v255
        %259 = vrot.lane.b32.xlu0 %v246, 126
        %v260 = vpop.permute.xlu0 %259
        %261 = vrot.lane.b32.xlu0 %v247, 126
        %v262 = vpop.permute.xlu0 %261
        %vm263 = vcmask 1031168
        %v264 = vsel %vm263, %v260, %v262
        %vm265 = vcmask 1043456
        %v266 = vsel %vm265, %v246, %v257
        %v267 = vld [vmem:[%s2] sm:$0xff]
        %vm268 = vcmask 97280
        %v270 = vsel %vm268, %v267, 0
        %v272 = vsel %vm265, %v264, 0
        %274 = vmatpush.msra.mxu0 0.0
        %275 = vmatpush.msra.mxu0 0.0
        %276 = vmatpush.msra.mxu0 0.0
        %277 = vmatpush.msra.mxu0 0.0
        %278 = vmatpush.msra.mxu0 0.0
        %279 = vmatpush.msra.mxu0 0.0
        %280 = vmatpush.msra.mxu0 0.0
        %281 = vmatpush.msra.mxu0 0.0
        %282 = vmatpush.msra.mxu0 0.0
        %283 = vmatpush.msra.mxu0 0.0
        %284 = vmatpush.msra.mxu0 0.0
        %285 = vmatpush.msra.mxu0 0.0
        %286 = vmatpush.msra.mxu0 0.0
        %287 = vmatpush.msra.mxu0 0.0
        %288 = vmatpush.msra.mxu0 %v272
        %289 = vmatpush.msra.mxu0 %v266
        %290 = vmatmul.f32.gmra.mxu0 %v270
        %v291 = vpop.f32.mrf.mxu0
        %v292 = vadd.f32 0.0, %v291
        %293 = vdwg.mxu0
        %v294 = vld [vmem:[%s3] sm:$0xff]
        %296 = vset.pattern.permute.xlu0 0
        %297 = vperm.xlu0 %296, %v294
        %v298 = vpop.permute.xlu0 %297
        %v300 = vmul.f32 %v292, %v298
        %301 = vset.pattern.permute.xlu0 1
        %302 = vperm.xlu0 %301, %v294
        %v303 = vpop.permute.xlu0 %302
        %v305 = vadd.f32 %v300, %v303
        %v306 = vmax.f32 %v305, 0.0
        %307 = vst [vmem:[%s231] sm:$0xff] %v306
        %s308 = sand.u32 %s138, 1
        %s309 = scalar_lea.sflag [#allocation3], %s308
        %s310 = sand.u32 %s138, 1
        %s311 = smul.addr %s310, 8
        %s312 = scalar_lea.vmem [#allocation2], %s311
        // Predicated region
        $region37: #{conv_bn_activate_forward.3} parent=35 // pred_check
          %p313 = pneg %p148
        $region38: #{conv_bn_activate_forward.3} parent=35 // pred_check_branch
          %315 = sbr.rel (%p313) target = $region40
        $region39: #{conv_bn_activate_forward.3} parent=35 // pred_region
          %317 = vsyncadd %s309, 0
          %s318 = sadd.s32 %s23, %s22
          %s319 = smul.addr %s318, 8
          %s320 = scalar_lea.hbm %s4, %s319
          %s322 = sshll.u32 %s312, 4
          %s323 = int_to_ptr.vmem [resolvable:$true] %s322
          %s324 = sshll.u32 %s320, 4
          %s325 = int_to_ptr.hbm [resolvable:$true] %s324
          %327 = dma.vmem_to_hbm [thread:$0]  %s323, 128, %s325, %s309
        $region40: #{conv_bn_activate_forward.3} parent=35 // pred_fallthru
          _
      $region36: #{conv_bn_activate_forward.3} parent=5 // pred_fallthru
        _
      %p328 = scmp.le.s32.totalorder 2, %s13
      // Predicated region
      $region41: #{conv_bn_activate_forward.3} parent=5 // pred_check
        %p329 = pneg %p328
      $region42: #{conv_bn_activate_forward.3} parent=5 // pred_check_branch
        %331 = sbr.rel (%p329) target = $region44
      $region43: #{conv_bn_activate_forward.3} parent=5 // pred_region
        %s332 = ssub.s32 %s13, 2
        // Predicated region
        $region45: #{conv_bn_activate_forward.3} parent=43 // pred_check
          %p333 = pneg %p154
        $region46: #{conv_bn_activate_forward.3} parent=43 // pred_check_branch
          %335 = sbr.rel (%p333) target = $region48
        $region47: #{conv_bn_activate_forward.3} parent=43 // pred_region
          %s336 = sand.u32 %s139, 1
          %s337 = scalar_lea.sflag [#allocation3], %s336
          %s338 = sand.u32 %s139, 1
          %s339 = smul.addr %s338, 8
          %s340 = scalar_lea.vmem [#allocation2], %s339
          %342 = dma.done %s337, 128
        $region48: #{conv_bn_activate_forward.3} parent=43 // pred_fallthru
          _
      $region44: #{conv_bn_activate_forward.3} parent=5 // pred_fallthru
        _
    $region6: #{conv_bn_activate_forward.3} parent=1 // loop_footer
      %s17 = sadd.s32 1, %s13
    $region7: #{conv_bn_activate_forward.3} parent=1 // loop_footer_branch
      %12 = sbr.rel target = $region3
    $region8: #{conv_bn_activate_forward.3} parent=1 // loop_exit
      _
    %343 = vsyncpa [#allocation3], 1
    %s344 = scalar_lea.sflag [#allocation3], 1
    %345 = vsyncpa %s344, 1

</llo_original>
